<compile_context>
chip_gen: v7x
topology: tpu7x:2x2x1
jax: 0.10.0
libtpu: 0.0.40
codegen_flags: <defaults>
</compile_context>

<pallas_src>
import functools

import jax
import jax.numpy as jnp
from jax import lax
from jax.experimental import pallas as pl
from jax.experimental.pallas import tpu as pltpu

# MMDLoss defaults (DeepDA): kernel_type='rbf', kernel_mul=2.0, kernel_num=5.
KERNEL_MUL = 2.0
KERNEL_NUM = 5


# --------------------------------------------------------------------------
# Tiling / budget helpers
# --------------------------------------------------------------------------
def _vmem_limit_bytes():
    """Conservative scoped-VMEM cap: safe on v7x (64 MiB physical per TC)."""
    cap = 48 * 1024 * 1024
    try:
        info = pltpu.get_tpu_info()
        phys = getattr(info, "vmem_capacity_bytes", None)
        if phys:
            cap = min(cap, int(phys) * 3 // 4)
    except Exception:
        pass
    return cap


def _choose_tiling(b):
    """Row-tile size and zero-padded batch for the pair grid.

    Pads awkward batch sizes up to a tile multiple (padded rows are masked)
    instead of degrading to tiny tiles, and keeps >= 2 row blocks whenever
    possible so the megacore-parallel i axis can use both v7x TensorCores.
    Returns (tm, b_pad) with b_pad % tm == 0 and tm % 8 == 0.
    """
    if b >= 1024:
        tm = 256
    elif b >= 256:
        tm = 128
    elif b > 8:
        b_pad = ((b + 15) // 16) * 16
        return b_pad // 2, b_pad          # two blocks, each a multiple of 8
    else:
        return 8, 8                       # tiny problem: one 8-row block
    b_pad = ((b + tm - 1) // tm) * tm
    return tm, b_pad


# --------------------------------------------------------------------------
# Pass 1: row norms + closed-form bandwidth scale
# --------------------------------------------------------------------------
def _mmd_stats_kernel(src_ref, tgt_ref, scale_ref, sqs_ref, sqt_ref,
                      colsum_ref, sumsq_ref, *, batch):
    i = pl.program_id(0)

    s = src_ref[...].astype(jnp.float32)
    t = tgt_ref[...].astype(jnp.float32)

    @pl.when(i == 0)
    def _():
        colsum_ref[...] = jnp.zeros_like(colsum_ref)
        sumsq_ref[0] = jnp.float32(0.0)

    sq_s = jnp.sum(s * s, axis=1, keepdims=True)     # (tm, 1)
    sq_t = jnp.sum(t * t, axis=1, keepdims=True)
    sqs_ref[...] = sq_s
    sqt_ref[...] = sq_t

    colsum_ref[...] += (jnp.sum(s, axis=0, keepdims=True)
                        + jnp.sum(t, axis=0, keepdims=True))
    sumsq_ref[0] += jnp.sum(sq_s) + jnp.sum(sq_t)

    @pl.when(i == pl.num_programs(0) - 1)
    def _():
        # Padded rows are all-zero, so they contribute nothing to colsum/sumsq;
        # use the REAL batch in the denominator.
        n = jnp.float32(2 * batch)
        colsum = colsum_ref[...]
        # sum_ij ||zi - zj||^2 closed form (O(nD)); degenerate data gives 0 and
        # thus an inf scale / NaN loss, matching the PyTorch reference.
        sum_l2 = 2.0 * n * sumsq_ref[0] - 2.0 * jnp.sum(colsum * colsum)
        bw0 = sum_l2 / (n * n - n) / (KERNEL_MUL ** (KERNEL_NUM // 2))
        scale_ref[0, 0] = 1.0 / (bw0 * (KERNEL_MUL ** (KERNEL_NUM - 1)))


# --------------------------------------------------------------------------
# Pass 2: tiled, megacore-parallel kernel-matrix block sums
# --------------------------------------------------------------------------
def _pair_tile_update(i, j, scale_ref, sq_si, sq_ti, sq_sj, sq_tj,
                      si, ti, sj, tj, out_ref, acc_ref):
    """Accumulate +K_SS +K_TT -2*K_ST for one (i, j) tile into acc_ref."""
    @pl.when(j == 0)
    def _():
        acc_ref[0] = jnp.float32(0.0)

    f32 = jnp.float32
    # Contract the feature axis of both operands (A · Bᵀ without an explicit
    # transpose / XLU vxpose of the j-side tile).
    contract = (((1,), (1,)), ((), ()))

    inv_bw = scale_ref[0, 0]        # 1 / (largest bandwidth bw0*mul^(K-1))
    two_inv = 2.0 * inv_bw

    # Pre-scale the (tiny) norm vectors so the per-element chain is
    # exp(2s*gram - a_i - a_j): one mul + two subs + clamp per element.
    a_si = sq_si * inv_bw           # (tm, 1)
    a_ti = sq_ti * inv_bw
    a_sj = sq_sj * inv_bw           # (1, tm)
    a_tj = sq_tj * inv_bw

    def block_sum(xi, xj, a_i, a_j):
        gram = lax.dot_general(xi, xj, contract, preferred_element_type=f32)
        expo = jnp.minimum(gram * two_inv - a_i - a_j, 0.0)   # == -l2*inv_bw, clamped
        # kernel_mul = 2: one EUP exp pass + repeated squaring on the VPU.
        e1 = jnp.exp(expo)
        e2 = e1 * e1
        e4 = e2 * e2
        e8 = e4 * e4
        e16 = e8 * e8
        return jnp.sum(e1 + e2 + e4 + e8 + e16)

    # Cross term: needed for every (i, j).
    acc_ref[0] += -2.0 * block_sum(si, tj, a_si, a_tj)

    # Within-domain terms: K_SS / K_TT are symmetric, so only evaluate the
    # upper-triangular (i, j) blocks; off-diagonal blocks count twice.
    @pl.when(j >= i)
    def _():
        w = jnp.where(j > i, f32(2.0), f32(1.0))
        acc_ref[0] += w * (block_sum(si, sj, a_si, a_sj)
                           + block_sum(ti, tj, a_ti, a_tj))

    @pl.when(j == pl.num_programs(1) - 1)
    def _():
        out_ref[0, 0] = acc_ref[0]


def _make_pair_kernel(tm, j_resident):
    if j_resident:
        # source/target are fully VMEM-resident (constant-index full blocks,
        # DMA'd once); both i- and j-side tiles are sliced from them in-kernel.
        def kernel(scale_ref, sqs_col, sqt_col, sqs_row, sqt_row,
                   s_ref, t_ref, out_ref, acc_ref):
            i = pl.program_id(0)
            j = pl.program_id(1)
            row0 = pl.multiple_of(i * tm, tm)
            col0 = pl.multiple_of(j * tm, tm)
            si = s_ref[pl.ds(row0, tm), :]
            ti = t_ref[pl.ds(row0, tm), :]
            sj = s_ref[pl.ds(col0, tm), :]
            tj = t_ref[pl.ds(col0, tm), :]
            sq_si = sqs_col[pl.ds(row0, tm), :]
            sq_ti = sqt_col[pl.ds(row0, tm), :]
            sq_sj = sqs_row[:, pl.ds(col0, tm)]
            sq_tj = sqt_row[:, pl.ds(col0, tm)]
            _pair_tile_update(i, j, scale_ref, sq_si, sq_ti, sq_sj, sq_tj,
                              si, ti, sj, tj, out_ref, acc_ref)
    else:
        # Large problems: stream (tm, D) blocks for both i- and j-sides.
        def kernel(scale_ref, sqs_col, sqt_col, sqs_row, sqt_row,
                   si_ref, ti_ref, sj_ref, tj_ref, out_ref, acc_ref):
            i = pl.program_id(0)
            j = pl.program_id(1)
            row0 = pl.multiple_of(i * tm, tm)
            col0 = pl.multiple_of(j * tm, tm)
            sq_si = sqs_col[pl.ds(row0, tm), :]
            sq_ti = sqt_col[pl.ds(row0, tm), :]
            sq_sj = sqs_row[:, pl.ds(col0, tm)]
            sq_tj = sqt_row[:, pl.ds(col0, tm)]
            _pair_tile_update(i, j, scale_ref, sq_si, sq_ti, sq_sj, sq_tj,
                              si_ref[...], ti_ref[...], sj_ref[...], tj_ref[...],
                              out_ref, acc_ref)
    return kernel


# --------------------------------------------------------------------------
# Wrapper
# --------------------------------------------------------------------------
def mmd_loss_pallas(source, target):
    """MMD (rbf) loss between source (B, D) and target (B, D)."""
    assert source.shape == target.shape, (
        "DeepDA MMD assumes equal source/target batch sizes")
    b, d = source.shape
    in_bytes = jnp.dtype(source.dtype).itemsize
    vmem_cap = _vmem_limit_bytes()
    tm, b_pad = _choose_tiling(b)

    # Zero-pad the batch up to a tile multiple; padded rows are masked below.
    if b_pad != b:
        source_p = jnp.pad(source, ((0, b_pad - b), (0, 0)))
        target_p = jnp.pad(target, ((0, b_pad - b), (0, 0)))
    else:
        source_p, target_p = source, target

    # ---- Pass 1: norms + bandwidth (pure HBM bandwidth; keep blocks inside
    # the VMEM cap — matters on v5e's small default scoped VMEM). ----
    tm1 = tm
    while (4 * tm1 * d * in_bytes > vmem_cap // 2
           and tm1 % 16 == 0 and b_pad % (tm1 // 2) == 0):
        tm1 //= 2
    n_blk1 = b_pad // tm1

    scale, sq_s, sq_t = pl.pallas_call(
        functools.partial(_mmd_stats_kernel, batch=b),
        out_shape=(jax.ShapeDtypeStruct((1, 1), jnp.float32),
                   jax.ShapeDtypeStruct((b_pad, 1), jnp.float32),
                   jax.ShapeDtypeStruct((b_pad, 1), jnp.float32)),
        grid=(n_blk1,),
        in_specs=[pl.BlockSpec((tm1, d), lambda i: (i, 0)),
                  pl.BlockSpec((tm1, d), lambda i: (i, 0))],
        out_specs=(pl.BlockSpec((1, 1), lambda i: (0, 0), memory_space=pltpu.SMEM),
                   pl.BlockSpec((tm1, 1), lambda i: (i, 0)),
                   pl.BlockSpec((tm1, 1), lambda i: (i, 0))),
        scratch_shapes=[pltpu.VMEM((1, d), jnp.float32),   # per-feature column sums
                        pltpu.SMEM((1,), jnp.float32)],    # sum of squared norms
        compiler_params=pltpu.CompilerParams(
            dimension_semantics=("arbitrary",),
            vmem_limit_bytes=vmem_cap),
    )(source_p, target_p)

    # Mask padded rows: a +huge squared norm drives exp(-l2*scale) to exactly 0
    # for every pair involving a padded row (no per-tile mask logic needed).
    if b_pad != b:
        valid = (jnp.arange(b_pad) < b)[:, None]
        big = jnp.float32(1e30)
        sq_s = jnp.where(valid, sq_s, big)
        sq_t = jnp.where(valid, sq_t, big)
    sq_s_row = sq_s.reshape(1, b_pad)   # lane-dense row form for the j side
    sq_t_row = sq_t.reshape(1, b_pad)

    # ---- Pass 2 footprint / residency decision. ----
    inter_bytes = 12 * tm * tm * 4                       # grams + exp temporaries
    resident_bytes = 2 * (2 * b_pad * d * in_bytes) + inter_bytes   # 2 slabs x 2 bufs
    j_resident = resident_bytes <= (3 * vmem_cap) // 4

    if not j_resident:
        # Streaming path: 4 blocked inputs x 2 buffers must fit the cap.
        while ((8 * tm * d * in_bytes + 12 * tm * tm * 4) > (3 * vmem_cap) // 4
               and tm % 16 == 0 and b_pad % (tm // 2) == 0):
            tm //= 2
    n_blk = b_pad // tm

    norm_specs = [
        pl.BlockSpec((b_pad, 1), lambda i, j: (0, 0)),   # sq_s column form (i side)
        pl.BlockSpec((b_pad, 1), lambda i, j: (0, 0)),   # sq_t column form
        pl.BlockSpec((1, b_pad), lambda i, j: (0, 0)),   # sq_s row form (j side)
        pl.BlockSpec((1, b_pad), lambda i, j: (0, 0)),   # sq_t row form
    ]
    if j_resident:
        # Full-extent constant-index blocks: DMA'd once, stay VMEM-resident.
        data_specs = [pl.BlockSpec((b_pad, d), lambda i, j: (0, 0)),
                      pl.BlockSpec((b_pad, d), lambda i, j: (0, 0))]
        operands = (scale, sq_s, sq_t, sq_s_row, sq_t_row, source_p, target_p)
    else:
        data_specs = [pl.BlockSpec((tm, d), lambda i, j: (i, 0)),   # source, i tile
                      pl.BlockSpec((tm, d), lambda i, j: (i, 0)),   # target, i tile
                      pl.BlockSpec((tm, d), lambda i, j: (j, 0)),   # source, j tile
                      pl.BlockSpec((tm, d), lambda i, j: (j, 0))]   # target, j tile
        operands = (scale, sq_s, sq_t, sq_s_row, sq_t_row,
                    source_p, target_p, source_p, target_p)

    partial_sums = pl.pallas_call(
        _make_pair_kernel(tm, j_resident),
        out_shape=jax.ShapeDtypeStruct((n_blk, 1), jnp.float32),
        grid=(n_blk, n_blk),
        in_specs=[pl.BlockSpec(memory_space=pltpu.SMEM)] + norm_specs + data_specs,
        out_specs=pl.BlockSpec((1, 1), lambda i, j: (i, 0),
                               memory_space=pltpu.SMEM),
        scratch_shapes=[pltpu.SMEM((1,), jnp.float32)],   # per-row-block accumulator
        compiler_params=pltpu.CompilerParams(
            dimension_semantics=("parallel", "arbitrary"),
            vmem_limit_bytes=vmem_cap),
    )(*operands)

    # Tiny scalar epilogue: means of the four equal-sized b x b blocks collapse
    # to (sum_SS + sum_TT - 2*sum_ST) / b^2 (real batch, pads contribute 0).
    return jnp.sum(partial_sums) / jnp.float32(b * b)


class TransferLoss:
    """JAX/Pallas port of DeepDA TransferLoss (dispatcher)."""

    def __init__(self, loss_type, **kwargs):
        self.loss_type = loss_type
        if loss_type == "mmd":
            self.loss_func = mmd_loss_pallas
        else:
            # TODO(synk): lmmd / coral / adv / daan / bnm / cfd branches not ported
            # (adv/daan need trainable discriminators, bnm needs SVD); fall back to 0.
            print("WARNING: No valid transfer loss function is used.")
            self.loss_func = lambda x, y: jnp.asarray(0, dtype=jnp.float32)

    def __call__(self, source, target, **kwargs):
        return self.loss_func(source, target, **kwargs)


# --------------------------------------------------------------------------
# Reference + self-test
# --------------------------------------------------------------------------
def _mmd_reference(source, target):
    """Pure-JAX reference mirroring the PyTorch MMDLoss('rbf') math."""
    total = jnp.concatenate([source, target], axis=0).astype(jnp.float32)
    n = total.shape[0]
    b = source.shape[0]
    diff = total[None, :, :] - total[:, None, :]
    l2 = jnp.sum(diff * diff, axis=2)
    bw = jnp.sum(l2) / (n * n - n)
    bw = bw / (KERNEL_MUL ** (KERNEL_NUM // 2))
    k = sum(jnp.exp(-l2 / (bw * (KERNEL_MUL ** i))) for i in range(KERNEL_NUM))
    return (jnp.mean(k[:b, :b]) + jnp.mean(k[b:, b:])
            - jnp.mean(k[:b, b:]) - jnp.mean(k[b:, :b]))


if __name__ == "__main__":
    key = jax.random.PRNGKey(0)
    loss_mod = TransferLoss("mmd")

    # Case 1: small aligned batch (single tile, resident path).
    k1, k2, k3, k4 = jax.random.split(key, 4)
    batch, hidden = 8, 32
    src = jax.random.normal(k1, (batch, hidden), dtype=jnp.float32)
    tgt = jax.random.normal(k2, (batch, hidden), dtype=jnp.float32) + 0.5
    loss = jax.block_until_ready(loss_mod(src, tgt))
    ref = _mmd_reference(src, tgt)
    assert jnp.allclose(loss, ref, rtol=1e-3, atol=1e-5), (loss, ref)

    # Case 2: awkward batch (padding + masking, 2x2 block grid, SS/TT symmetry).
    batch2, hidden2 = 24, 160
    src2 = jax.random.normal(k3, (batch2, hidden2), dtype=jnp.float32)
    tgt2 = jax.random.normal(k4, (batch2, hidden2), dtype=jnp.float32) + 0.5
    loss2 = jax.block_until_ready(loss_mod(src2, tgt2))
    ref2 = _mmd_reference(src2, tgt2)
    assert jnp.allclose(loss2, ref2, rtol=1e-3, atol=1e-5), (loss2, ref2)

    print("KERNEL_OK")
</pallas_src>

<mosaic_0001>
module attributes {stable_mosaic.version = 11 : i64} {
  func.func @_mmd_stats_kernel(%arg0: i32, %arg1: memref<8x32xf32, #tpu.memory_space<vmem>>, %arg2: memref<8x32xf32, #tpu.memory_space<vmem>>, %arg3: memref<1x1xf32, #tpu.memory_space<smem>>, %arg4: memref<8x1xf32, #tpu.memory_space<vmem>>, %arg5: memref<8x1xf32, #tpu.memory_space<vmem>>, %arg6: memref<1x32xf32, #tpu.memory_space<vmem>>, %arg7: memref<1xf32, #tpu.memory_space<smem>>) attributes {dimension_semantics = [#tpu.dimension_semantics<arbitrary>], iteration_bounds = array<i64: 1>, scalar_prefetch = 0 : i64, scratch_operands = 2 : i64, tpu.core_type = #tpu.core_type<tc>, window_params = [{transform_indices = @transform_0, window_bounds = array<i64: 8, 32>}, {transform_indices = @transform_1, window_bounds = array<i64: 8, 32>}, {transform_indices = @transform_2, window_bounds = array<i64: 1, 1>}, {transform_indices = @transform_3, window_bounds = array<i64: 8, 1>}, {transform_indices = @transform_4, window_bounds = array<i64: 8, 1>}]} {
    %c0 = arith.constant 0 : index
    %c0_0 = arith.constant 0 : index
    %0 = vector.load %arg1[%c0, %c0_0] : memref<8x32xf32, #tpu.memory_space<vmem>>, vector<8x32xf32>
    %c0_1 = arith.constant 0 : index
    %c0_2 = arith.constant 0 : index
    %1 = vector.load %arg2[%c0_1, %c0_2] : memref<8x32xf32, #tpu.memory_space<vmem>>, vector<8x32xf32>
    %c0_i32 = arith.constant 0 : i32
    %2 = arith.cmpi eq, %arg0, %c0_i32 : i32
    %3 = arith.extui %2 : i1 to i32
    %c0_i32_3 = arith.constant 0 : i32
    %4 = arith.cmpi ne, %3, %c0_i32_3 : i32
    scf.if %4 {
      %cst_21 = arith.constant 0.000000e+00 : f32
      %36 = vector.broadcast %cst_21 : f32 to vector<1x32xf32>
      %c0_22 = arith.constant 0 : index
      %c0_23 = arith.constant 0 : index
      %37 = vector.load %arg6[%c0_22, %c0_23] : memref<1x32xf32, #tpu.memory_space<vmem>>, vector<1x32xf32>
      tpu.vector_store %arg6[%c0_22, %c0_23], %36 {strides = array<i32>} : memref<1x32xf32, #tpu.memory_space<vmem>>, vector<1x32xf32>,
      %cst_24 = arith.constant 0.000000e+00 : f32
      %c0_25 = arith.constant 0 : index
      %38 = memref.load %arg7[%c0_25] : memref<1xf32, #tpu.memory_space<smem>>
      memref.store %cst_24, %arg7[%c0_25] : memref<1xf32, #tpu.memory_space<smem>>
    } else {
    }
    %5 = arith.mulf %0, %0 : vector<8x32xf32>
    %cst = arith.constant dense<0.000000e+00> : vector<8xf32>
    %6 = vector.multi_reduction <add>, %5, %cst [1] : vector<8x32xf32> to vector<8xf32>
    %7 = vector.shape_cast %6 : vector<8xf32> to vector<8x1xf32>
    %8 = arith.mulf %1, %1 : vector<8x32xf32>
    %cst_4 = arith.constant dense<0.000000e+00> : vector<8xf32>
    %9 = vector.multi_reduction <add>, %8, %cst_4 [1] : vector<8x32xf32> to vector<8xf32>
    %10 = vector.shape_cast %9 : vector<8xf32> to vector<8x1xf32>
    %c0_5 = arith.constant 0 : index
    %c0_6 = arith.constant 0 : index
    %11 = vector.load %arg4[%c0_5, %c0_6] : memref<8x1xf32, #tpu.memory_space<vmem>>, vector<8x1xf32>
    tpu.vector_store %arg4[%c0_5, %c0_6], %7 {strides = array<i32>} : memref<8x1xf32, #tpu.memory_space<vmem>>, vector<8x1xf32>,
    %c0_7 = arith.constant 0 : index
    %c0_8 = arith.constant 0 : index
    %12 = vector.load %arg5[%c0_7, %c0_8] : memref<8x1xf32, #tpu.memory_space<vmem>>, vector<8x1xf32>
    tpu.vector_store %arg5[%c0_7, %c0_8], %10 {strides = array<i32>} : memref<8x1xf32, #tpu.memory_space<vmem>>, vector<8x1xf32>,
    %c0_9 = arith.constant 0 : index
    %c0_10 = arith.constant 0 : index
    %13 = vector.load %arg6[%c0_9, %c0_10] : memref<1x32xf32, #tpu.memory_space<vmem>>, vector<1x32xf32>
    %cst_11 = arith.constant dense<0.000000e+00> : vector<32xf32>
    %14 = vector.multi_reduction <add>, %0, %cst_11 [0] : vector<8x32xf32> to vector<32xf32>
    %15 = vector.shape_cast %14 : vector<32xf32> to vector<1x32xf32>
    %cst_12 = arith.constant dense<0.000000e+00> : vector<32xf32>
    %16 = vector.multi_reduction <add>, %1, %cst_12 [0] : vector<8x32xf32> to vector<32xf32>
    %17 = vector.shape_cast %16 : vector<32xf32> to vector<1x32xf32>
    %18 = arith.addf %15, %17 : vector<1x32xf32>
    %19 = arith.addf %13, %18 : vector<1x32xf32>
    %c0_13 = arith.constant 0 : index
    %c0_14 = arith.constant 0 : index
    %20 = vector.load %arg6[%c0_13, %c0_14] : memref<1x32xf32, #tpu.memory_space<vmem>>, vector<1x32xf32>
    tpu.vector_store %arg6[%c0_13, %c0_14], %19 {strides = array<i32>} : memref<1x32xf32, #tpu.memory_space<vmem>>, vector<1x32xf32>,
    %c0_15 = arith.constant 0 : index
    %21 = memref.load %arg7[%c0_15] : memref<1xf32, #tpu.memory_space<smem>>
    %22 = vector.shape_cast %7 : vector<8x1xf32> to vector<1x8x1xf32>
    %cst_16 = arith.constant dense<0.000000e+00> : vector<1xf32>
    %23 = vector.multi_reduction <add>, %22, %cst_16 [1, 2] : vector<1x8x1xf32> to vector<1xf32>
    %24 = vector.shape_cast %23 : vector<1xf32> to vector<1x1x1xf32>
    %25 = vector.extract %24[0, 0, 0] : f32 from vector<1x1x1xf32>
    %26 = vector.shape_cast %10 : vector<8x1xf32> to vector<1x8x1xf32>
    %cst_17 = arith.constant dense<0.000000e+00> : vector<1xf32>
    %27 = vector.multi_reduction <add>, %26, %cst_17 [1, 2] : vector<1x8x1xf32> to vector<1xf32>
    %28 = vector.shape_cast %27 : vector<1xf32> to vector<1x1x1xf32>
    %29 = vector.extract %28[0, 0, 0] : f32 from vector<1x1x1xf32>
    %30 = arith.addf %25, %29 : f32
    %31 = arith.addf %21, %30 : f32
    %c0_18 = arith.constant 0 : index
    %32 = memref.load %arg7[%c0_18] : memref<1xf32, #tpu.memory_space<smem>>
    memref.store %31, %arg7[%c0_18] : memref<1xf32, #tpu.memory_space<smem>>
    %c0_i32_19 = arith.constant 0 : i32
    %33 = arith.cmpi eq, %arg0, %c0_i32_19 : i32
    %34 = arith.extui %33 : i1 to i32
    %c0_i32_20 = arith.constant 0 : i32
    %35 = arith.cmpi ne, %34, %c0_i32_20 : i32
    scf.if %35 {
      %c0_21 = arith.constant 0 : index
      %c0_22 = arith.constant 0 : index
      %36 = vector.load %arg6[%c0_21, %c0_22] : memref<1x32xf32, #tpu.memory_space<vmem>>, vector<1x32xf32>
      %cst_23 = arith.constant 2.000000e+00 : f32
      %cst_24 = arith.constant 1.600000e+01 : f32
      %37 = arith.mulf %cst_23, %cst_24 : f32
      %c0_25 = arith.constant 0 : index
      %38 = memref.load %arg7[%c0_25] : memref<1xf32, #tpu.memory_space<smem>>
      %39 = arith.mulf %37, %38 : f32
      %40 = arith.mulf %36, %36 : vector<1x32xf32>
      %41 = vector.shape_cast %40 : vector<1x32xf32> to vector<1x1x32xf32>
      %cst_26 = arith.constant dense<0.000000e+00> : vector<1xf32>
      %42 = vector.multi_reduction <add>, %41, %cst_26 [1, 2] : vector<1x1x32xf32> to vector<1xf32>
      %43 = vector.shape_cast %42 : vector<1xf32> to vector<1x1x1xf32>
      %44 = vector.extract %43[0, 0, 0] : f32 from vector<1x1x1xf32>
      %cst_27 = arith.constant 2.000000e+00 : f32
      %45 = arith.mulf %cst_27, %44 : f32
      %46 = arith.subf %39, %45 : f32
      %cst_28 = arith.constant 1.600000e+01 : f32
      %cst_29 = arith.constant 1.600000e+01 : f32
      %47 = arith.mulf %cst_28, %cst_29 : f32
      %cst_30 = arith.constant 1.600000e+01 : f32
      %48 = arith.subf %47, %cst_30 : f32
      %49 = arith.divf %46, %48 : f32
      %cst_31 = arith.constant 4.000000e+00 : f32
      %50 = arith.divf %49, %cst_31 : f32
      %cst_32 = arith.constant 1.600000e+01 : f32
      %51 = arith.mulf %50, %cst_32 : f32
      %cst_33 = arith.constant 1.000000e+00 : f32
      %52 = arith.divf %cst_33, %51 : f32
      %c0_34 = arith.constant 0 : index
      %c0_35 = arith.constant 0 : index
      %53 = memref.load %arg3[%c0_34, %c0_35] : memref<1x1xf32, #tpu.memory_space<smem>>
      memref.store %52, %arg3[%c0_34, %c0_35] : memref<1x1xf32, #tpu.memory_space<smem>>
    } else {
    }
    return
  }
  func.func @transform_0(%arg0: i32) -> (i32, i32) {
    %c0_i32 = arith.constant 0 : i32
    %c0_i32_0 = arith.constant 0 : i32
    return %arg0, %c0_i32 : i32, i32
  }
  func.func @transform_1(%arg0: i32) -> (i32, i32) {
    %c0_i32 = arith.constant 0 : i32
    %c0_i32_0 = arith.constant 0 : i32
    return %arg0, %c0_i32 : i32, i32
  }
  func.func @transform_2(%arg0: i32) -> (i32, i32) {
    %c0_i32 = arith.constant 0 : i32
    %c0_i32_0 = arith.constant 0 : i32
    %c0_i32_1 = arith.constant 0 : i32
    return %c0_i32, %c0_i32_0 : i32, i32
  }
  func.func @transform_3(%arg0: i32) -> (i32, i32) {
    %c0_i32 = arith.constant 0 : i32
    %c0_i32_0 = arith.constant 0 : i32
    return %arg0, %c0_i32 : i32, i32
  }
  func.func @transform_4(%arg0: i32) -> (i32, i32) {
    %c0_i32 = arith.constant 0 : i32
    %c0_i32_0 = arith.constant 0 : i32
    return %arg0, %c0_i32 : i32, i32
  }
}

</mosaic_0001>

<llo_original>
// kernel: tpu_custom_call.1
$region0: #{tpu_custom_call.1}
  #allocation0 [shape = 'u32[]', space=smem, size = 0x4, offset = 0x4, fixed_abs, tag = 'smem constant byte address 0x4 - core index']
  #allocation1 [shape = 'u32[144,128]{1,0:T(1,128)}', space=vmem, size = 0x12000, scoped, tag = 'internal scratch']
  #allocation2 [shape = 'f32[1,32]{1,0:T(1,128)}', space=vmem, size = 0x200, scoped, tag = 'scratch operand']
  #allocation3 [shape = 'f32[1]{0:T(128)}', space=smem, size = 0x200, scoped, tag = 'scratch operand']
  %s0 = inlined_call_operand.hbm [shape: f32[8,32], index: 0, kind: input, shape index: {}]
  %s1 = inlined_call_operand.hbm [shape: f32[8,32], index: 1, kind: input, shape index: {}]
  %s2 = inlined_call_operand.hbm [shape: f32[1,1], index: 2, kind: output, shape index: {0}]
  %s3 = inlined_call_operand.vmem [shape: f32[8,1], index: 3, kind: output, shape index: {1}]
  %s4 = inlined_call_operand.vmem [shape: f32[8,1], index: 4, kind: output, shape index: {2}]
  %5 = xla_tuple %s2, %s3, %s4
  %s6 = sld [smem:[#allocation0]]
  $region50: #{tpu_custom_call.1} parent=0
    _
  %s8 = ssub.s32 1, %s6
  %s9 = scalar_select 0, %s8, %s6
  $region1: #{tpu_custom_call.1} parent=0
    #allocation4 [shape = 'u8[4096]{0}', space=vmem, size = 0x1000, scoped, tag = 'input window, operand 0, single buffered']
    #allocation5 [shape = 's32[1]{0}', space=sflag, size = 0x4, scoped, tag = 'scoped memory for tpu_custom_call.1']
    #allocation6 [shape = 's32[1]{0}', space=sflag, size = 0x4, scoped, tag = 'scoped memory for tpu_custom_call.1']
    #allocation7 [shape = 'u8[4096]{0}', space=vmem, size = 0x1000, scoped, tag = 'input window, operand 1, single buffered']
    #allocation8 [shape = 's32[1]{0}', space=sflag, size = 0x4, scoped, tag = 'scoped memory for tpu_custom_call.1']
    #allocation9 [shape = 'u8[512]{0}', space=smem, size = 0x200, scoped, tag = 'output window, operand 0, single buffered']
    %10 = vsyncpa [#allocation5], 0
    %11 = vsyncpa [#allocation8], 0
    %12 = vsyncpa [#allocation6], 0
    // Predicated region
    $region2: #{tpu_custom_call.1} parent=1 // pred_check
      _
    $region3: #{tpu_custom_call.1} parent=1 // pred_check_branch
      %14 = sbr.rel (0) target = $region5
    $region4: #{tpu_custom_call.1} parent=1 // pred_region
      %s16 = ssub.s32 128, 128
      %17 = vsyncadd [#allocation5], %s16
      %s19 = sshll.u32 [#allocation4], 4
      %s20 = int_to_ptr.vmem [resolvable:$true] %s19
      %22 = dma.hbm_to_vmem [thread:$0]  %s0, 128, %s20, [#allocation5]
    $region5: #{tpu_custom_call.1} parent=1 // pred_fallthru
      _
    // Predicated region
    $region6: #{tpu_custom_call.1} parent=1 // pred_check
      _
    $region7: #{tpu_custom_call.1} parent=1 // pred_check_branch
      %24 = sbr.rel (0) target = $region9
    $region8: #{tpu_custom_call.1} parent=1 // pred_region
      %s26 = ssub.s32 128, 128
      %27 = vsyncadd [#allocation8], %s26
      %s29 = sshll.u32 [#allocation7], 4
      %s30 = int_to_ptr.vmem [resolvable:$true] %s29
      %32 = dma.hbm_to_vmem [thread:$0]  %s1, 128, %s30, [#allocation8]
    $region9: #{tpu_custom_call.1} parent=1 // pred_fallthru
      _
    // Predicated region
    $region10: #{tpu_custom_call.1} parent=1 // pred_check
      _
    $region11: #{tpu_custom_call.1} parent=1 // pred_check_branch
      %34 = sbr.rel (0) target = $region13
    $region12: #{tpu_custom_call.1} parent=1 // pred_region
      %35 = dma.done [#allocation5], 128
    $region13: #{tpu_custom_call.1} parent=1 // pred_fallthru
      _
    // Predicated region
    $region14: #{tpu_custom_call.1} parent=1 // pred_check
      _
    $region15: #{tpu_custom_call.1} parent=1 // pred_check_branch
      %37 = sbr.rel (0) target = $region17
    $region16: #{tpu_custom_call.1} parent=1 // pred_region
      %38 = dma.done [#allocation8], 128
    $region17: #{tpu_custom_call.1} parent=1 // pred_fallthru
      _
    %v39 = vld [vmem:[#allocation4] sm:$0xff]
    %v40 = vld [vmem:[#allocation7] sm:$0xff]
    %p41 = scmp.eq.s32.totalorder 0, 0
    // Predicated region
    $region18: #{tpu_custom_call.1} parent=1 // pred_check
      %p42 = pneg %p41
    $region19: #{tpu_custom_call.1} parent=1 // pred_check_branch
      %44 = sbr.rel (%p42) target = $region21
    $region20: #{tpu_custom_call.1} parent=1 // pred_region
      %vm45 = vcmask 253952
      %46 = vst.msk [vmem:[#allocation2] sm:$0x1] %vm45, 0.0
      %s47 = scalar_lea.smem [#allocation3], 0
      %48 = sst [smem:[%s47]] 0.0
    $region21: #{tpu_custom_call.1} parent=1 // pred_fallthru
      _
    %v49 = vmul.f32 %v39, %v39
    %vm50 = vcmask 261120
    %v51 = vsel %vm50, %v49, 0.0
    %52 = vadd.xlane.f32.xlu0 %v51
    %v53 = vpop.xlane.xlu0 %52
    %v54 = vmul.f32 %v40, %v40
    %v55 = vsel %vm50, %v54, 0.0
    %56 = vadd.xlane.f32.xlu0 %v55
    %v57 = vpop.xlane.xlu0 %56
    %vm58 = vcmask 7168
    %59 = vst.msk [vmem:[%s3] sm:$0xff] %vm58, %v53
    %60 = vst.msk [vmem:[%s4] sm:$0xff] %vm58, %v57
    %v61 = vld [vmem:[#allocation2] sm:$0x1]
    %v62 = vsel %vm50, %v39, 0.0
    %v63 = vrot.slane %v62, 4
    %v64 = vadd.f32 %v62, %v63
    %v65 = vrot.slane %v64, 2
    %v66 = vadd.f32 %v64, %v65
    %v67 = vrot.slane %v66, 1
    %v68 = vadd.f32 %v66, %v67
    %v69 = vsel %vm50, %v40, 0.0
    %v70 = vrot.slane %v69, 4
    %v71 = vadd.f32 %v69, %v70
    %v72 = vrot.slane %v71, 2
    %v73 = vadd.f32 %v71, %v72
    %v74 = vrot.slane %v73, 1
    %v75 = vadd.f32 %v73, %v74
    %v76 = vadd.f32 %v68, %v75
    %v77 = vadd.f32 %v61, %v76
    %vm78 = vcmask 253952
    %79 = vst.msk [vmem:[#allocation2] sm:$0x1] %vm78, %v77
    %s80 = sld [smem:[#allocation3]]
    %v81 = vsel %vm58, %v53, 0.0
    %82 = vadd.xlane.f32.xlu0 %v81
    %v83 = vpop.xlane.xlu0 %82
    %v84 = vrot.slane %v83, 4
    %v85 = vadd.f32 %v83, %v84
    %v86 = vrot.slane %v85, 2
    %v87 = vadd.f32 %v85, %v86
    %v88 = vrot.slane %v87, 1
    %v89 = vadd.f32 %v87, %v88
    %s90 = vtos %v89
    %v91 = vsel %vm58, %v57, 0.0
    %92 = vadd.xlane.f32.xlu0 %v91
    %v93 = vpop.xlane.xlu0 %92
    %v94 = vrot.slane %v93, 4
    %v95 = vadd.f32 %v93, %v94
    %v96 = vrot.slane %v95, 2
    %v97 = vadd.f32 %v95, %v96
    %v98 = vrot.slane %v97, 1
    %v99 = vadd.f32 %v97, %v98
    %s100 = vtos %v99
    %s101 = sadd.f32 %s90, %s100
    %s102 = sadd.f32 %s80, %s101
    %s103 = scalar_lea.smem [#allocation3], 0
    %104 = sst [smem:[%s103]] %s102
    // Predicated region
    $region22: #{tpu_custom_call.1} parent=1 // pred_check
      %p105 = pneg %p41
    $region23: #{tpu_custom_call.1} parent=1 // pred_check_branch
      %107 = sbr.rel (%p105) target = $region25
    $region24: #{tpu_custom_call.1} parent=1 // pred_region
      %v108 = vld [vmem:[#allocation2] sm:$0x1]
      %s109 = sld [smem:[#allocation3]]
      %s110 = smul.f32 %s109, 32.0
      %v111 = vmul.f32 %v108, %v108
      %v112 = vsel %vm78, %v111, 0.0
      %113 = vadd.xlane.f32.xlu0 %v112
      %v114 = vpop.xlane.xlu0 %113
      %v115 = vrot.slane %v114, 4
      %v116 = vadd.f32 %v114, %v115
      %v117 = vrot.slane %v116, 2
      %v118 = vadd.f32 %v116, %v117
      %v119 = vrot.slane %v118, 1
      %v120 = vadd.f32 %v118, %v119
      %s121 = vtos %v120
      %s122 = smul.f32 %s121, 2.0
      %s123 = ssub.f32 %s110, %s122
      %v124 = vrcp.pop 240.0
      %s125 = vtos %v124
      %s126 = smul.f32 %s123, %s125
      %v127 = vrcp.pop 4.0
      %s128 = vtos %v127
      %s129 = smul.f32 %s126, %s128
      %s130 = smul.f32 %s129, 16.0
      %v131 = vstv %s130
      %v132 = vrcp.pop %v131
      %s133 = vtos %v132
      %s134 = scalar_lea.smem [#allocation9], 0
      %135 = sst [smem:[%s134]] %s133
    $region25: #{tpu_custom_call.1} parent=1 // pred_fallthru
      _
    // Predicated region
    $region26: #{tpu_custom_call.1} parent=1 // pred_check
      _
    $region27: #{tpu_custom_call.1} parent=1 // pred_check_branch
      %137 = sbr.rel (0) target = $region29
    $region28: #{tpu_custom_call.1} parent=1 // pred_region
      %s139 = ssub.s32 16, 16
      %140 = vsyncadd [#allocation6], %s139
      %143 = dma.smem_to_hbm [#allocation9], 16, %s2, [#allocation6]
    $region29: #{tpu_custom_call.1} parent=1 // pred_fallthru
      _
    // Predicated region
    $region30: #{tpu_custom_call.1} parent=1 // pred_check
      _
    $region31: #{tpu_custom_call.1} parent=1 // pred_check_branch
      %145 = sbr.rel (0) target = $region33
    $region32: #{tpu_custom_call.1} parent=1 // pred_region
      _
    $region33: #{tpu_custom_call.1} parent=1 // pred_fallthru
      _
    // Predicated region
    $region34: #{tpu_custom_call.1} parent=1 // pred_check
      _
    $region35: #{tpu_custom_call.1} parent=1 // pred_check_branch
      %147 = sbr.rel (0) target = $region37
    $region36: #{tpu_custom_call.1} parent=1 // pred_region
      _
    $region37: #{tpu_custom_call.1} parent=1 // pred_fallthru
      _
    // Predicated region
    $region38: #{tpu_custom_call.1} parent=1 // pred_check
      _
    $region39: #{tpu_custom_call.1} parent=1 // pred_check_branch
      %149 = sbr.rel (0) target = $region41
    $region40: #{tpu_custom_call.1} parent=1 // pred_region
      %150 = dma.done [#allocation6], 16
    $region41: #{tpu_custom_call.1} parent=1 // pred_fallthru
      _
    // Predicated region
    $region42: #{tpu_custom_call.1} parent=1 // pred_check
      _
    $region43: #{tpu_custom_call.1} parent=1 // pred_check_branch
      %152 = sbr.rel (0) target = $region45
    $region44: #{tpu_custom_call.1} parent=1 // pred_region
      _
    $region45: #{tpu_custom_call.1} parent=1 // pred_fallthru
      _
    // Predicated region
    $region46: #{tpu_custom_call.1} parent=1 // pred_check
      _
    $region47: #{tpu_custom_call.1} parent=1 // pred_check_branch
      %154 = sbr.rel (0) target = $region49
    $region48: #{tpu_custom_call.1} parent=1 // pred_region
      _
    $region49: #{tpu_custom_call.1} parent=1 // pred_fallthru
      _
    %155 = sfence
    %156 = vsyncpa [#allocation5], 1
    %157 = vsyncpa [#allocation8], 1
    %158 = vsyncpa [#allocation6], 1

</llo_original>
